<compile_context>
chip_gen: v7x
topology: tpu7x:2x2x1
jax: 0.10.0
libtpu: 0.0.40
codegen_flags: <defaults>
</compile_context>

<pallas_src>
import functools
import math

import jax
import jax.numpy as jnp
from jax import lax
from jax.experimental import pallas as pl
from jax.experimental.pallas import tpu as pltpu

EPS = 1e-5          # nn.LayerNorm default
_LANES = 128
_TARGET_BLOCK_BYTES = 8 << 20   # ~8 MiB of HBM traffic (x in + out) per grid step


def _cdiv(a, b):
    return -(-a // b)


def _round_up(n, m):
    return _cdiv(n, m) * m


def _vmem_capacity_bytes():
    # Per-TensorCore VMEM (v5e/v6e: 128 MiB, v7x: 64 MiB). get_tpu_info reports the
    # per-core figure; clamp to a sane per-core range as a guard and keep the
    # conservative 64 MiB fallback.
    try:
        cap = int(pltpu.get_tpu_info().vmem_capacity_bytes)
        return min(max(cap, 16 << 20), 128 << 20)
    except Exception:
        return 64 << 20


def _num_tensorcores():
    # Best-effort TensorCore count. Default 1 (v5e/v6e) so we never force an
    # artificial grid split on single-TC chips.
    try:
        info = pltpu.get_tpu_info()
        for attr in ("num_cores", "core_count", "tensorcore_count", "num_tensorcores"):
            v = getattr(info, attr, None)
            if isinstance(v, int) and v > 0:
                return v
    except Exception:
        pass
    try:
        v = getattr(jax.devices()[0], "num_cores", None)
        if isinstance(v, int) and v > 0:
            return v
    except Exception:
        pass
    return 1


# ----------------------------------------------------------------------------
# Kernels: generic path (D used directly as lanes)
# ----------------------------------------------------------------------------
def _normalize_rows(x, g, b):
    """Row-wise LayerNorm of a (tm, D) tile in f32 (two-pass, matches nn.LayerNorm)."""
    x = x.astype(jnp.float32)
    inv_d = 1.0 / float(x.shape[-1])
    mean = jnp.sum(x, axis=-1, keepdims=True) * inv_d
    c = x - mean
    var = jnp.sum(c * c, axis=-1, keepdims=True) * inv_d
    return c * lax.rsqrt(var + EPS) * g + b


def _ln_kernel(x_ref, g_ref, b_ref, o_ref):
    o_ref[...] = _normalize_rows(x_ref[...], g_ref[...], b_ref[...]).astype(o_ref.dtype)


def _ln_mask_kernel(x_ref, m_ref, g_ref, b_ref, o_ref):
    y = _normalize_rows(x_ref[...], g_ref[...], b_ref[...])
    o_ref[...] = (y * m_ref[...].astype(jnp.float32)).astype(o_ref.dtype)


# ----------------------------------------------------------------------------
# Kernels: lane-folded small-D path (k = 128 // D rows packed per 128-lane row)
# ----------------------------------------------------------------------------
@functools.lru_cache(maxsize=None)
def _fold_kernels(d, k):
    kd = d * k
    inv_d = 1.0 / float(d)

    def lane_index():
        return lax.broadcasted_iota(jnp.int32, (1, kd), 1)

    def normalize(x, g, b):
        x = x.astype(jnp.float32)
        lane = lane_index()
        # Segmented (per length-d lane group) mean / variance: exact f32 masked
        # lane reductions; k is small so this stays under the block's DMA time.
        mean = jnp.zeros_like(x)
        for j in range(k):
            sel = (lane >= j * d) & (lane < (j + 1) * d)
            s_j = jnp.sum(jnp.where(sel, x, 0.0), axis=-1, keepdims=True)
            mean = jnp.where(sel, s_j * inv_d, mean)
        c = x - mean
        c2 = c * c
        inv = jnp.zeros_like(x)
        for j in range(k):
            sel = (lane >= j * d) & (lane < (j + 1) * d)
            v_j = jnp.sum(jnp.where(sel, c2, 0.0), axis=-1, keepdims=True)
            inv = jnp.where(sel, lax.rsqrt(v_j * inv_d + EPS), inv)
        return c * inv * g + b

    def ln_kernel(x_ref, g_ref, b_ref, o_ref):
        o_ref[...] = normalize(x_ref[...], g_ref[...], b_ref[...]).astype(o_ref.dtype)

    def ln_mask_kernel(x_ref, m_ref, g_ref, b_ref, o_ref):
        y = normalize(x_ref[...], g_ref[...], b_ref[...])
        m = m_ref[...].astype(jnp.float32)          # (tm, k) per-original-row scalars
        lane = lane_index()
        mfull = jnp.zeros_like(y)
        for j in range(k):
            sel = (lane >= j * d) & (lane < (j + 1) * d)
            mfull = jnp.where(sel, m[:, j:j + 1], mfull)
        o_ref[...] = (y * mfull).astype(o_ref.dtype)

    return ln_kernel, ln_mask_kernel


# ----------------------------------------------------------------------------
# Tiling policy
# ----------------------------------------------------------------------------
def _pick_block_rows(rows, bytes_per_row, sub, n_tc):
    """Row-tile: byte-targeted, VMEM-budgeted, sublane aligned, TC-count aware."""
    if rows <= sub:
        return max(int(rows), 1)            # single exact block (block dim == array dim)
    # Single budget shared with the requested vmem_limit: half the per-core
    # capacity minus slack for params / compiler scratch.
    budget = max(_vmem_capacity_bytes() // 2 - (4 << 20), 8 << 20)
    vmem_rows = max((budget // (2 * bytes_per_row)) // sub * sub, sub)   # double-buffered
    tgt_rows = _round_up(_cdiv(_TARGET_BLOCK_BYTES, bytes_per_row), sub)
    block_rows = min(vmem_rows, max(tgt_rows, sub))
    if block_rows >= rows:
        if n_tc > 1 and rows > n_tc * sub:
            # Multi-TC (v7x): shard the "parallel" axis across both TensorCores.
            return int(_round_up(_cdiv(rows, n_tc), sub))
        return int(rows)                    # single exact block
    block_rows = min(block_rows, _round_up(rows, sub))
    if n_tc > 1 and rows > n_tc * sub:
        # Round the step count to a multiple of the TC count for load balance.
        steps = _round_up(_cdiv(rows, block_rows), n_tc)
        block_rows = min(block_rows, _round_up(_cdiv(rows, steps), sub))
    return int(max(block_rows, sub))


# ----------------------------------------------------------------------------
# pallas_call wrapper
# ----------------------------------------------------------------------------
def _run_ln(x2, g2, b2, m2, *, fold_d, fold_k, block_rows=None):
    rows, d_lanes = x2.shape
    itemsize = jnp.dtype(x2.dtype).itemsize
    with_mask = m2 is not None
    mask_cols = int(m2.shape[1]) if with_mask else 0
    mask_item = int(jnp.dtype(m2.dtype).itemsize) if with_mask else 0

    bytes_per_row = 2 * d_lanes * itemsize + mask_cols * mask_item   # x in + out + mask
    sub = max(8, 32 // itemsize)
    n_tc = _num_tensorcores()
    if block_rows is None:
        block_rows = _pick_block_rows(rows, bytes_per_row, sub, n_tc)
    grid_steps = _cdiv(rows, block_rows)

    if fold_k > 1:
        ln_k, ln_mk = _fold_kernels(fold_d, fold_k)
        kernel = ln_mk if with_mask else ln_k
    else:
        kernel = _ln_mask_kernel if with_mask else _ln_kernel

    # Tiny blocks on a long grid cannot hide DMA setup behind double buffering;
    # triple-buffer the x stream in that (rare) regime.
    x_kwargs = {}
    if grid_steps > 2 and block_rows * d_lanes * itemsize < (1 << 20):
        x_kwargs = dict(pipeline_mode=pl.Buffered(3))

    in_specs = [pl.BlockSpec((block_rows, d_lanes), lambda i: (i, 0), **x_kwargs)]
    args = [x2]
    if with_mask:
        in_specs.append(pl.BlockSpec((block_rows, mask_cols), lambda i: (i, 0)))
        args.append(m2)
    in_specs += [
        pl.BlockSpec((1, d_lanes), lambda i: (0, 0)),
        pl.BlockSpec((1, d_lanes), lambda i: (0, 0)),
    ]
    args += [g2, b2]

    # Request a VMEM limit consistent with the sizing budget above.
    working = 2 * block_rows * bytes_per_row + 8 * d_lanes * 4
    vmem_limit = int(min(_vmem_capacity_bytes() // 2,
                         max(working + (4 << 20), 16 << 20)))

    # Ragged tail: the last block may read garbage rows and drop OOB writes;
    # rows are independent so valid outputs are never contaminated.
    return pl.pallas_call(
        kernel,
        out_shape=jax.ShapeDtypeStruct((rows, d_lanes), x2.dtype),
        grid_spec=pltpu.PrefetchScalarGridSpec(
            num_scalar_prefetch=0,
            grid=(grid_steps,),
            in_specs=in_specs,
            out_specs=pl.BlockSpec((block_rows, d_lanes), lambda i: (i, 0)),
        ),
        compiler_params=pltpu.CompilerParams(
            dimension_semantics=("parallel",),
            vmem_limit_bytes=vmem_limit,
        ),
    )(*args)


def _layernorm_impl(x, gamma, beta, mask=None, *, block_rows=None):
    shape = x.shape
    d = int(shape[-1])
    rows = int(math.prod(shape[:-1])) if len(shape) > 1 else 1
    x2 = x.reshape(rows, d)

    fold_k = _LANES // d if (d < _LANES and _LANES % d == 0) else 1

    if fold_k > 1:
        # Lane-folded small-D path: pack fold_k rows per 128-lane row so loads and
        # stores are lane dense (unmasked vst) -- the dominant lever for D < 128.
        rows_p = _round_up(rows, fold_k)
        m1 = None
        if mask is not None:
            # TODO(synk): per review the cast belongs in-kernel (pass the bool mask and
            # jnp.where); kept host-side f32 until i1 kernel inputs are verified.
            m1 = mask.reshape(rows).astype(jnp.float32)
        if rows_p != rows:
            x2 = jnp.pad(x2, ((0, rows_p - rows), (0, 0)))
            if m1 is not None:
                m1 = jnp.pad(m1, (0, rows_p - rows))
        rows_f = rows_p // fold_k
        d_lanes = fold_k * d                 # == 128
        xf = x2.reshape(rows_f, d_lanes)
        g2 = jnp.tile(gamma.astype(jnp.float32), fold_k).reshape(1, d_lanes)
        b2 = jnp.tile(beta.astype(jnp.float32), fold_k).reshape(1, d_lanes)
        mf = m1.reshape(rows_f, fold_k) if m1 is not None else None
        out = _run_ln(xf, g2, b2, mf, fold_d=d, fold_k=fold_k, block_rows=block_rows)
        out = out.reshape(rows_p, d)[:rows]
        return out.reshape(shape)

    # TODO(synk): D < 128 with 128 % D != 0 still runs the generic (lane-underfilled)
    # path; a general lane-folding with uneven segments is left out for clarity.
    g2 = gamma.astype(jnp.float32).reshape(1, d)
    b2 = beta.astype(jnp.float32).reshape(1, d)
    mf = None
    if mask is not None:
        mf = mask.reshape(rows, 1).astype(jnp.float32)
    out = _run_ln(x2, g2, b2, mf, fold_d=d, fold_k=1, block_rows=block_rows)
    return out.reshape(shape)


def layernorm_pallas(x, gamma, beta, *, block_rows=None):
    """LayerNorm over the last axis of x (any leading shape), via Pallas."""
    return _layernorm_impl(x, gamma, beta, None, block_rows=block_rows)


def layernorm_mask_pallas(x, mask, gamma, beta, *, block_rows=None):
    """Fused LayerNorm(x) * mask[..., None] in a single HBM pass."""
    return _layernorm_impl(x, gamma, beta, mask, block_rows=block_rows)


# ----------------------------------------------------------------------------
# Module
# ----------------------------------------------------------------------------
class PreNorm2pm:
    """JAX/Pallas equivalent of the PyTorch PreNorm2pm module."""

    def __init__(self, dim, fn, key, *, fuse_elementwise_mask=False):
        # nn.LayerNorm(dim) parameters: weight (dim,), bias (dim,).
        # Deterministic synthetic init (not a checkpoint load).
        k_w, k_b = jax.random.split(key)
        self.gamma = jax.random.normal(k_w, (dim,), jnp.float32) * 0.1 + 1.0
        self.beta = jax.random.normal(k_b, (dim,), jnp.float32) * 0.1
        self.fn = fn
        # When fn is exactly the elementwise mask multiply (example_fn), fuse it
        # into the LayerNorm kernel to avoid an extra HBM round trip.
        self.fuse = fuse_elementwise_mask

    def __call__(self, x, mask, **kwargs):
        if self.fuse and not kwargs:
            return layernorm_mask_pallas(x, mask, self.gamma, self.beta)
        normed = layernorm_pallas(x, self.gamma, self.beta)
        return self.fn(normed, mask, **kwargs)


# TODO(synk): `fn` is an arbitrary user-supplied sub-module in the original code;
# here it is a simple masked pass-through. When it is this elementwise op it is
# fused into the kernel; any other fn runs as plain JAX on the kernel's output.
def example_fn(x, mask):
    return x * mask[..., None].astype(x.dtype)


def _reference(x, gamma, beta, mask):
    # Pure-JAX reference for the full forward (LayerNorm + example_fn).
    xf = x.astype(jnp.float32)
    mean = jnp.mean(xf, axis=-1, keepdims=True)
    var = jnp.mean((xf - mean) ** 2, axis=-1, keepdims=True)
    y = (xf - mean) / jnp.sqrt(var + EPS) * gamma + beta
    return example_fn(y.astype(x.dtype), mask)


if __name__ == "__main__":
    key = jax.random.PRNGKey(0)
    k_x, k_m, k_p, k_x2, k_m2, k_x3, k_m3 = jax.random.split(key, 7)

    # --- Case 1: module's nominal small shape (D=32 -> lane-folded path). ---
    B, N, D = 2, 8, 32
    x = jax.random.normal(k_x, (B, N, D), jnp.float32)
    mask = jax.random.uniform(k_m, (B, N)) > 0.3

    module = PreNorm2pm(D, example_fn, k_p, fuse_elementwise_mask=True)
    ref = _reference(x, module.gamma, module.beta, mask)

    out = jax.block_until_ready(module(x, mask))
    assert out.shape == (B, N, D)
    assert jnp.allclose(out, ref, atol=1e-5, rtol=1e-5), "mismatch (fused, D=32)"

    module_generic = PreNorm2pm(D, example_fn, k_p, fuse_elementwise_mask=False)
    out2 = jax.block_until_ready(module_generic(x, mask))
    assert jnp.allclose(out2, ref, atol=1e-5, rtol=1e-5), "mismatch (unfused, D=32)"

    # --- Case 2: rows not a multiple of the fold factor (pad + slice path). ---
    x_r = jax.random.normal(k_x2, (2, 9, D), jnp.float32)
    mask_r = jax.random.uniform(k_m2, (2, 9)) > 0.5
    ref_r = _reference(x_r, module.gamma, module.beta, mask_r)
    out_r = jax.block_until_ready(module(x_r, mask_r))
    assert jnp.allclose(out_r, ref_r, atol=1e-5, rtol=1e-5), "mismatch (ragged fold)"

    # --- Case 3: D = 128 (generic lane-dense path, no folding). ---
    D3 = 128
    x3 = jax.random.normal(k_x3, (2, 8, D3), jnp.float32)
    mask3 = jax.random.uniform(k_m3, (2, 8)) > 0.3
    module3 = PreNorm2pm(D3, example_fn, k_p, fuse_elementwise_mask=True)
    ref3 = _reference(x3, module3.gamma, module3.beta, mask3)
    out3 = jax.block_until_ready(module3(x3, mask3))
    assert jnp.allclose(out3, ref3, atol=1e-5, rtol=1e-5), "mismatch (fused, D=128)"

    print("KERNEL_OK")
</pallas_src>

<mosaic_0001>
module attributes {stable_mosaic.version = 11 : i64} {
  func.func @ln_mask_kernel(%arg0: i32, %arg1: memref<4x128xf32, #tpu.memory_space<vmem>>, %arg2: memref<4x4xf32, #tpu.memory_space<vmem>>, %arg3: memref<1x128xf32, #tpu.memory_space<vmem>>, %arg4: memref<1x128xf32, #tpu.memory_space<vmem>>, %arg5: memref<4x128xf32, #tpu.memory_space<vmem>>) attributes {dimension_semantics = [#tpu.dimension_semantics<parallel>], iteration_bounds = array<i64: 1>, scalar_prefetch = 0 : i64, scratch_operands = 0 : i64, tpu.core_type = #tpu.core_type<tc>, window_params = [{transform_indices = @transform_0, window_bounds = array<i64: 4, 128>}, {transform_indices = @transform_1, window_bounds = array<i64: 4, 4>}, {pipeline_mode = #tpu.pipeline_mode<synchronous>, transform_indices = @transform_2, window_bounds = array<i64: 1, 128>}, {pipeline_mode = #tpu.pipeline_mode<synchronous>, transform_indices = @transform_3, window_bounds = array<i64: 1, 128>}, {transform_indices = @transform_4, window_bounds = array<i64: 4, 128>}]} {
    %c0 = arith.constant 0 : index
    %c0_0 = arith.constant 0 : index
    %0 = vector.load %arg1[%c0, %c0_0] : memref<4x128xf32, #tpu.memory_space<vmem>>, vector<4x128xf32>
    %c0_1 = arith.constant 0 : index
    %c0_2 = arith.constant 0 : index
    %1 = vector.load %arg3[%c0_1, %c0_2] : memref<1x128xf32, #tpu.memory_space<vmem>>, vector<1x128xf32>
    %c0_3 = arith.constant 0 : index
    %c0_4 = arith.constant 0 : index
    %2 = vector.load %arg4[%c0_3, %c0_4] : memref<1x128xf32, #tpu.memory_space<vmem>>, vector<1x128xf32>
    %3 = tpu.iota {dimensions = array<i32: 1>} : vector<1x128xi32>
    %cst = arith.constant 0.000000e+00 : f32
    %4 = vector.broadcast %cst : f32 to vector<4x128xf32>
    %c0_i32 = arith.constant 0 : i32
    %5 = vector.broadcast %c0_i32 : i32 to vector<1x128xi32>
    %6 = arith.cmpi sge, %3, %5 : vector<1x128xi32>
    %c32_i32 = arith.constant 32 : i32
    %7 = vector.broadcast %c32_i32 : i32 to vector<1x128xi32>
    %8 = arith.cmpi slt, %3, %7 : vector<1x128xi32>
    %9 = arith.andi %6, %8 : vector<1x128xi1>
    %cst_5 = arith.constant 0.000000e+00 : f32
    %10 = vector.shape_cast %9 : vector<1x128xi1> to vector<1x128xi1>
    %11 = vector.broadcast %10 : vector<1x128xi1> to vector<4x128xi1>
    %12 = vector.broadcast %cst_5 : f32 to vector<4x128xf32>
    %13 = arith.select %11, %0, %12 : vector<4x128xi1>, vector<4x128xf32>
    %cst_6 = arith.constant dense<0.000000e+00> : vector<4xf32>
    %14 = vector.multi_reduction <add>, %13, %cst_6 [1] : vector<4x128xf32> to vector<4xf32>
    %15 = vector.shape_cast %14 : vector<4xf32> to vector<4x1xf32>
    %cst_7 = arith.constant 3.125000e-02 : f32
    %16 = vector.broadcast %cst_7 : f32 to vector<4x1xf32>
    %17 = arith.mulf %15, %16 : vector<4x1xf32>
    %18 = vector.shape_cast %9 : vector<1x128xi1> to vector<1x128xi1>
    %19 = vector.broadcast %18 : vector<1x128xi1> to vector<4x128xi1>
    %20 = vector.shape_cast %17 : vector<4x1xf32> to vector<4x1xf32>
    %21 = vector.broadcast %20 : vector<4x1xf32> to vector<4x128xf32>
    %22 = arith.select %19, %21, %4 : vector<4x128xi1>, vector<4x128xf32>
    %c32_i32_8 = arith.constant 32 : i32
    %23 = vector.broadcast %c32_i32_8 : i32 to vector<1x128xi32>
    %24 = arith.cmpi sge, %3, %23 : vector<1x128xi32>
    %c64_i32 = arith.constant 64 : i32
    %25 = vector.broadcast %c64_i32 : i32 to vector<1x128xi32>
    %26 = arith.cmpi slt, %3, %25 : vector<1x128xi32>
    %27 = arith.andi %24, %26 : vector<1x128xi1>
    %cst_9 = arith.constant 0.000000e+00 : f32
    %28 = vector.shape_cast %27 : vector<1x128xi1> to vector<1x128xi1>
    %29 = vector.broadcast %28 : vector<1x128xi1> to vector<4x128xi1>
    %30 = vector.broadcast %cst_9 : f32 to vector<4x128xf32>
    %31 = arith.select %29, %0, %30 : vector<4x128xi1>, vector<4x128xf32>
    %cst_10 = arith.constant dense<0.000000e+00> : vector<4xf32>
    %32 = vector.multi_reduction <add>, %31, %cst_10 [1] : vector<4x128xf32> to vector<4xf32>
    %33 = vector.shape_cast %32 : vector<4xf32> to vector<4x1xf32>
    %cst_11 = arith.constant 3.125000e-02 : f32
    %34 = vector.broadcast %cst_11 : f32 to vector<4x1xf32>
    %35 = arith.mulf %33, %34 : vector<4x1xf32>
    %36 = vector.shape_cast %27 : vector<1x128xi1> to vector<1x128xi1>
    %37 = vector.broadcast %36 : vector<1x128xi1> to vector<4x128xi1>
    %38 = vector.shape_cast %35 : vector<4x1xf32> to vector<4x1xf32>
    %39 = vector.broadcast %38 : vector<4x1xf32> to vector<4x128xf32>
    %40 = arith.select %37, %39, %22 : vector<4x128xi1>, vector<4x128xf32>
    %c64_i32_12 = arith.constant 64 : i32
    %41 = vector.broadcast %c64_i32_12 : i32 to vector<1x128xi32>
    %42 = arith.cmpi sge, %3, %41 : vector<1x128xi32>
    %c96_i32 = arith.constant 96 : i32
    %43 = vector.broadcast %c96_i32 : i32 to vector<1x128xi32>
    %44 = arith.cmpi slt, %3, %43 : vector<1x128xi32>
    %45 = arith.andi %42, %44 : vector<1x128xi1>
    %cst_13 = arith.constant 0.000000e+00 : f32
    %46 = vector.shape_cast %45 : vector<1x128xi1> to vector<1x128xi1>
    %47 = vector.broadcast %46 : vector<1x128xi1> to vector<4x128xi1>
    %48 = vector.broadcast %cst_13 : f32 to vector<4x128xf32>
    %49 = arith.select %47, %0, %48 : vector<4x128xi1>, vector<4x128xf32>
    %cst_14 = arith.constant dense<0.000000e+00> : vector<4xf32>
    %50 = vector.multi_reduction <add>, %49, %cst_14 [1] : vector<4x128xf32> to vector<4xf32>
    %51 = vector.shape_cast %50 : vector<4xf32> to vector<4x1xf32>
    %cst_15 = arith.constant 3.125000e-02 : f32
    %52 = vector.broadcast %cst_15 : f32 to vector<4x1xf32>
    %53 = arith.mulf %51, %52 : vector<4x1xf32>
    %54 = vector.shape_cast %45 : vector<1x128xi1> to vector<1x128xi1>
    %55 = vector.broadcast %54 : vector<1x128xi1> to vector<4x128xi1>
    %56 = vector.shape_cast %53 : vector<4x1xf32> to vector<4x1xf32>
    %57 = vector.broadcast %56 : vector<4x1xf32> to vector<4x128xf32>
    %58 = arith.select %55, %57, %40 : vector<4x128xi1>, vector<4x128xf32>
    %c96_i32_16 = arith.constant 96 : i32
    %59 = vector.broadcast %c96_i32_16 : i32 to vector<1x128xi32>
    %60 = arith.cmpi sge, %3, %59 : vector<1x128xi32>
    %c128_i32 = arith.constant 128 : i32
    %61 = vector.broadcast %c128_i32 : i32 to vector<1x128xi32>
    %62 = arith.cmpi slt, %3, %61 : vector<1x128xi32>
    %63 = arith.andi %60, %62 : vector<1x128xi1>
    %cst_17 = arith.constant 0.000000e+00 : f32
    %64 = vector.shape_cast %63 : vector<1x128xi1> to vector<1x128xi1>
    %65 = vector.broadcast %64 : vector<1x128xi1> to vector<4x128xi1>
    %66 = vector.broadcast %cst_17 : f32 to vector<4x128xf32>
    %67 = arith.select %65, %0, %66 : vector<4x128xi1>, vector<4x128xf32>
    %cst_18 = arith.constant dense<0.000000e+00> : vector<4xf32>
    %68 = vector.multi_reduction <add>, %67, %cst_18 [1] : vector<4x128xf32> to vector<4xf32>
    %69 = vector.shape_cast %68 : vector<4xf32> to vector<4x1xf32>
    %cst_19 = arith.constant 3.125000e-02 : f32
    %70 = vector.broadcast %cst_19 : f32 to vector<4x1xf32>
    %71 = arith.mulf %69, %70 : vector<4x1xf32>
    %72 = vector.shape_cast %63 : vector<1x128xi1> to vector<1x128xi1>
    %73 = vector.broadcast %72 : vector<1x128xi1> to vector<4x128xi1>
    %74 = vector.shape_cast %71 : vector<4x1xf32> to vector<4x1xf32>
    %75 = vector.broadcast %74 : vector<4x1xf32> to vector<4x128xf32>
    %76 = arith.select %73, %75, %58 : vector<4x128xi1>, vector<4x128xf32>
    %77 = arith.subf %0, %76 : vector<4x128xf32>
    %78 = arith.mulf %77, %77 : vector<4x128xf32>
    %cst_20 = arith.constant 0.000000e+00 : f32
    %79 = vector.broadcast %cst_20 : f32 to vector<4x128xf32>
    %c0_i32_21 = arith.constant 0 : i32
    %80 = vector.broadcast %c0_i32_21 : i32 to vector<1x128xi32>
    %81 = arith.cmpi sge, %3, %80 : vector<1x128xi32>
    %c32_i32_22 = arith.constant 32 : i32
    %82 = vector.broadcast %c32_i32_22 : i32 to vector<1x128xi32>
    %83 = arith.cmpi slt, %3, %82 : vector<1x128xi32>
    %84 = arith.andi %81, %83 : vector<1x128xi1>
    %cst_23 = arith.constant 0.000000e+00 : f32
    %85 = vector.shape_cast %84 : vector<1x128xi1> to vector<1x128xi1>
    %86 = vector.broadcast %85 : vector<1x128xi1> to vector<4x128xi1>
    %87 = vector.broadcast %cst_23 : f32 to vector<4x128xf32>
    %88 = arith.select %86, %78, %87 : vector<4x128xi1>, vector<4x128xf32>
    %cst_24 = arith.constant dense<0.000000e+00> : vector<4xf32>
    %89 = vector.multi_reduction <add>, %88, %cst_24 [1] : vector<4x128xf32> to vector<4xf32>
    %90 = vector.shape_cast %89 : vector<4xf32> to vector<4x1xf32>
    %cst_25 = arith.constant 3.125000e-02 : f32
    %91 = vector.broadcast %cst_25 : f32 to vector<4x1xf32>
    %92 = arith.mulf %90, %91 : vector<4x1xf32>
    %cst_26 = arith.constant 9.99999974E-6 : f32
    %93 = vector.broadcast %cst_26 : f32 to vector<4x1xf32>
    %94 = arith.addf %92, %93 : vector<4x1xf32>
    %95 = math.rsqrt %94 : vector<4x1xf32>
    %96 = vector.shape_cast %84 : vector<1x128xi1> to vector<1x128xi1>
    %97 = vector.broadcast %96 : vector<1x128xi1> to vector<4x128xi1>
    %98 = vector.shape_cast %95 : vector<4x1xf32> to vector<4x1xf32>
    %99 = vector.broadcast %98 : vector<4x1xf32> to vector<4x128xf32>
    %100 = arith.select %97, %99, %79 : vector<4x128xi1>, vector<4x128xf32>
    %c32_i32_27 = arith.constant 32 : i32
    %101 = vector.broadcast %c32_i32_27 : i32 to vector<1x128xi32>
    %102 = arith.cmpi sge, %3, %101 : vector<1x128xi32>
    %c64_i32_28 = arith.constant 64 : i32
    %103 = vector.broadcast %c64_i32_28 : i32 to vector<1x128xi32>
    %104 = arith.cmpi slt, %3, %103 : vector<1x128xi32>
    %105 = arith.andi %102, %104 : vector<1x128xi1>
    %cst_29 = arith.constant 0.000000e+00 : f32
    %106 = vector.shape_cast %105 : vector<1x128xi1> to vector<1x128xi1>
    %107 = vector.broadcast %106 : vector<1x128xi1> to vector<4x128xi1>
    %108 = vector.broadcast %cst_29 : f32 to vector<4x128xf32>
    %109 = arith.select %107, %78, %108 : vector<4x128xi1>, vector<4x128xf32>
    %cst_30 = arith.constant dense<0.000000e+00> : vector<4xf32>
    %110 = vector.multi_reduction <add>, %109, %cst_30 [1] : vector<4x128xf32> to vector<4xf32>
    %111 = vector.shape_cast %110 : vector<4xf32> to vector<4x1xf32>
    %cst_31 = arith.constant 3.125000e-02 : f32
    %112 = vector.broadcast %cst_31 : f32 to vector<4x1xf32>
    %113 = arith.mulf %111, %112 : vector<4x1xf32>
    %cst_32 = arith.constant 9.99999974E-6 : f32
    %114 = vector.broadcast %cst_32 : f32 to vector<4x1xf32>
    %115 = arith.addf %113, %114 : vector<4x1xf32>
    %116 = math.rsqrt %115 : vector<4x1xf32>
    %117 = vector.shape_cast %105 : vector<1x128xi1> to vector<1x128xi1>
    %118 = vector.broadcast %117 : vector<1x128xi1> to vector<4x128xi1>
    %119 = vector.shape_cast %116 : vector<4x1xf32> to vector<4x1xf32>
    %120 = vector.broadcast %119 : vector<4x1xf32> to vector<4x128xf32>
    %121 = arith.select %118, %120, %100 : vector<4x128xi1>, vector<4x128xf32>
    %c64_i32_33 = arith.constant 64 : i32
    %122 = vector.broadcast %c64_i32_33 : i32 to vector<1x128xi32>
    %123 = arith.cmpi sge, %3, %122 : vector<1x128xi32>
    %c96_i32_34 = arith.constant 96 : i32
    %124 = vector.broadcast %c96_i32_34 : i32 to vector<1x128xi32>
    %125 = arith.cmpi slt, %3, %124 : vector<1x128xi32>
    %126 = arith.andi %123, %125 : vector<1x128xi1>
    %cst_35 = arith.constant 0.000000e+00 : f32
    %127 = vector.shape_cast %126 : vector<1x128xi1> to vector<1x128xi1>
    %128 = vector.broadcast %127 : vector<1x128xi1> to vector<4x128xi1>
    %129 = vector.broadcast %cst_35 : f32 to vector<4x128xf32>
    %130 = arith.select %128, %78, %129 : vector<4x128xi1>, vector<4x128xf32>
    %cst_36 = arith.constant dense<0.000000e+00> : vector<4xf32>
    %131 = vector.multi_reduction <add>, %130, %cst_36 [1] : vector<4x128xf32> to vector<4xf32>
    %132 = vector.shape_cast %131 : vector<4xf32> to vector<4x1xf32>
    %cst_37 = arith.constant 3.125000e-02 : f32
    %133 = vector.broadcast %cst_37 : f32 to vector<4x1xf32>
    %134 = arith.mulf %132, %133 : vector<4x1xf32>
    %cst_38 = arith.constant 9.99999974E-6 : f32
    %135 = vector.broadcast %cst_38 : f32 to vector<4x1xf32>
    %136 = arith.addf %134, %135 : vector<4x1xf32>
    %137 = math.rsqrt %136 : vector<4x1xf32>
    %138 = vector.shape_cast %126 : vector<1x128xi1> to vector<1x128xi1>
    %139 = vector.broadcast %138 : vector<1x128xi1> to vector<4x128xi1>
    %140 = vector.shape_cast %137 : vector<4x1xf32> to vector<4x1xf32>
    %141 = vector.broadcast %140 : vector<4x1xf32> to vector<4x128xf32>
    %142 = arith.select %139, %141, %121 : vector<4x128xi1>, vector<4x128xf32>
    %c96_i32_39 = arith.constant 96 : i32
    %143 = vector.broadcast %c96_i32_39 : i32 to vector<1x128xi32>
    %144 = arith.cmpi sge, %3, %143 : vector<1x128xi32>
    %c128_i32_40 = arith.constant 128 : i32
    %145 = vector.broadcast %c128_i32_40 : i32 to vector<1x128xi32>
    %146 = arith.cmpi slt, %3, %145 : vector<1x128xi32>
    %147 = arith.andi %144, %146 : vector<1x128xi1>
    %cst_41 = arith.constant 0.000000e+00 : f32
    %148 = vector.shape_cast %147 : vector<1x128xi1> to vector<1x128xi1>
    %149 = vector.broadcast %148 : vector<1x128xi1> to vector<4x128xi1>
    %150 = vector.broadcast %cst_41 : f32 to vector<4x128xf32>
    %151 = arith.select %149, %78, %150 : vector<4x128xi1>, vector<4x128xf32>
    %cst_42 = arith.constant dense<0.000000e+00> : vector<4xf32>
    %152 = vector.multi_reduction <add>, %151, %cst_42 [1] : vector<4x128xf32> to vector<4xf32>
    %153 = vector.shape_cast %152 : vector<4xf32> to vector<4x1xf32>
    %cst_43 = arith.constant 3.125000e-02 : f32
    %154 = vector.broadcast %cst_43 : f32 to vector<4x1xf32>
    %155 = arith.mulf %153, %154 : vector<4x1xf32>
    %cst_44 = arith.constant 9.99999974E-6 : f32
    %156 = vector.broadcast %cst_44 : f32 to vector<4x1xf32>
    %157 = arith.addf %155, %156 : vector<4x1xf32>
    %158 = math.rsqrt %157 : vector<4x1xf32>
    %159 = vector.shape_cast %147 : vector<1x128xi1> to vector<1x128xi1>
    %160 = vector.broadcast %159 : vector<1x128xi1> to vector<4x128xi1>
    %161 = vector.shape_cast %158 : vector<4x1xf32> to vector<4x1xf32>
    %162 = vector.broadcast %161 : vector<4x1xf32> to vector<4x128xf32>
    %163 = arith.select %160, %162, %142 : vector<4x128xi1>, vector<4x128xf32>
    %164 = arith.mulf %77, %163 : vector<4x128xf32>
    %165 = vector.broadcast %1 : vector<1x128xf32> to vector<4x128xf32>
    %166 = arith.mulf %164, %165 : vector<4x128xf32>
    %167 = vector.broadcast %2 : vector<1x128xf32> to vector<4x128xf32>
    %168 = arith.addf %166, %167 : vector<4x128xf32>
    %c0_45 = arith.constant 0 : index
    %c0_46 = arith.constant 0 : index
    %169 = vector.load %arg2[%c0_45, %c0_46] : memref<4x4xf32, #tpu.memory_space<vmem>>, vector<4x4xf32>
    %170 = tpu.iota {dimensions = array<i32: 1>} : vector<1x128xi32>
    %cst_47 = arith.constant 0.000000e+00 : f32
    %171 = vector.broadcast %cst_47 : f32 to vector<4x128xf32>
    %c0_i32_48 = arith.constant 0 : i32
    %172 = vector.broadcast %c0_i32_48 : i32 to vector<1x128xi32>
    %173 = arith.cmpi sge, %170, %172 : vector<1x128xi32>
    %c32_i32_49 = arith.constant 32 : i32
    %174 = vector.broadcast %c32_i32_49 : i32 to vector<1x128xi32>
    %175 = arith.cmpi slt, %170, %174 : vector<1x128xi32>
    %176 = arith.andi %173, %175 : vector<1x128xi1>
    %177 = vector.extract_strided_slice %169 {offsets = [0, 0], sizes = [4, 1], strides = [1, 1]} : vector<4x4xf32> to vector<4x1xf32>
    %178 = vector.shape_cast %176 : vector<1x128xi1> to vector<1x128xi1>
    %179 = vector.broadcast %178 : vector<1x128xi1> to vector<4x128xi1>
    %180 = vector.shape_cast %177 : vector<4x1xf32> to vector<4x1xf32>
    %181 = vector.broadcast %180 : vector<4x1xf32> to vector<4x128xf32>
    %182 = arith.select %179, %181, %171 : vector<4x128xi1>, vector<4x128xf32>
    %c32_i32_50 = arith.constant 32 : i32
    %183 = vector.broadcast %c32_i32_50 : i32 to vector<1x128xi32>
    %184 = arith.cmpi sge, %170, %183 : vector<1x128xi32>
    %c64_i32_51 = arith.constant 64 : i32
    %185 = vector.broadcast %c64_i32_51 : i32 to vector<1x128xi32>
    %186 = arith.cmpi slt, %170, %185 : vector<1x128xi32>
    %187 = arith.andi %184, %186 : vector<1x128xi1>
    %188 = vector.extract_strided_slice %169 {offsets = [0, 1], sizes = [4, 1], strides = [1, 1]} : vector<4x4xf32> to vector<4x1xf32>
    %189 = vector.shape_cast %187 : vector<1x128xi1> to vector<1x128xi1>
    %190 = vector.broadcast %189 : vector<1x128xi1> to vector<4x128xi1>
    %191 = vector.shape_cast %188 : vector<4x1xf32> to vector<4x1xf32>
    %192 = vector.broadcast %191 : vector<4x1xf32> to vector<4x128xf32>
    %193 = arith.select %190, %192, %182 : vector<4x128xi1>, vector<4x128xf32>
    %c64_i32_52 = arith.constant 64 : i32
    %194 = vector.broadcast %c64_i32_52 : i32 to vector<1x128xi32>
    %195 = arith.cmpi sge, %170, %194 : vector<1x128xi32>
    %c96_i32_53 = arith.constant 96 : i32
    %196 = vector.broadcast %c96_i32_53 : i32 to vector<1x128xi32>
    %197 = arith.cmpi slt, %170, %196 : vector<1x128xi32>
    %198 = arith.andi %195, %197 : vector<1x128xi1>
    %199 = vector.extract_strided_slice %169 {offsets = [0, 2], sizes = [4, 1], strides = [1, 1]} : vector<4x4xf32> to vector<4x1xf32>
    %200 = vector.shape_cast %198 : vector<1x128xi1> to vector<1x128xi1>
    %201 = vector.broadcast %200 : vector<1x128xi1> to vector<4x128xi1>
    %202 = vector.shape_cast %199 : vector<4x1xf32> to vector<4x1xf32>
    %203 = vector.broadcast %202 : vector<4x1xf32> to vector<4x128xf32>
    %204 = arith.select %201, %203, %193 : vector<4x128xi1>, vector<4x128xf32>
    %c96_i32_54 = arith.constant 96 : i32
    %205 = vector.broadcast %c96_i32_54 : i32 to vector<1x128xi32>
    %206 = arith.cmpi sge, %170, %205 : vector<1x128xi32>
    %c128_i32_55 = arith.constant 128 : i32
    %207 = vector.broadcast %c128_i32_55 : i32 to vector<1x128xi32>
    %208 = arith.cmpi slt, %170, %207 : vector<1x128xi32>
    %209 = arith.andi %206, %208 : vector<1x128xi1>
    %210 = vector.extract_strided_slice %169 {offsets = [0, 3], sizes = [4, 1], strides = [1, 1]} : vector<4x4xf32> to vector<4x1xf32>
    %211 = vector.shape_cast %209 : vector<1x128xi1> to vector<1x128xi1>
    %212 = vector.broadcast %211 : vector<1x128xi1> to vector<4x128xi1>
    %213 = vector.shape_cast %210 : vector<4x1xf32> to vector<4x1xf32>
    %214 = vector.broadcast %213 : vector<4x1xf32> to vector<4x128xf32>
    %215 = arith.select %212, %214, %204 : vector<4x128xi1>, vector<4x128xf32>
    %216 = arith.mulf %168, %215 : vector<4x128xf32>
    %c0_56 = arith.constant 0 : index
    %c0_57 = arith.constant 0 : index
    %217 = vector.load %arg5[%c0_56, %c0_57] : memref<4x128xf32, #tpu.memory_space<vmem>>, vector<4x128xf32>
    tpu.vector_store %arg5[%c0_56, %c0_57], %216 {strides = array<i32>} : memref<4x128xf32, #tpu.memory_space<vmem>>, vector<4x128xf32>,
    return
  }
  func.func @transform_0(%arg0: i32) -> (i32, i32) {
    %c0_i32 = arith.constant 0 : i32
    %c0_i32_0 = arith.constant 0 : i32
    return %arg0, %c0_i32 : i32, i32
  }
  func.func @transform_1(%arg0: i32) -> (i32, i32) {
    %c0_i32 = arith.constant 0 : i32
    %c0_i32_0 = arith.constant 0 : i32
    return %arg0, %c0_i32 : i32, i32
  }
  func.func @transform_2(%arg0: i32) -> (i32, i32) {
    %c0_i32 = arith.constant 0 : i32
    %c0_i32_0 = arith.constant 0 : i32
    %c0_i32_1 = arith.constant 0 : i32
    return %c0_i32, %c0_i32_0 : i32, i32
  }
  func.func @transform_3(%arg0: i32) -> (i32, i32) {
    %c0_i32 = arith.constant 0 : i32
    %c0_i32_0 = arith.constant 0 : i32
    %c0_i32_1 = arith.constant 0 : i32
    return %c0_i32, %c0_i32_0 : i32, i32
  }
  func.func @transform_4(%arg0: i32) -> (i32, i32) {
    %c0_i32 = arith.constant 0 : i32
    %c0_i32_0 = arith.constant 0 : i32
    return %arg0, %c0_i32 : i32, i32
  }
}

</mosaic_0001>

<llo_original>
// kernel: tpu_custom_call.1
$region0: #{tpu_custom_call.1}
  #allocation0 [shape = 'u32[]', space=smem, size = 0x4, offset = 0x4, fixed_abs, tag = 'smem constant byte address 0x4 - core index']
  #allocation1 [shape = 'u32[144,128]{1,0:T(1,128)}', space=vmem, size = 0x12000, scoped, tag = 'internal scratch']
  %s0 = inlined_call_operand.hbm [shape: f32[4,128], index: 0, kind: input, shape index: {}]
  %s1 = inlined_call_operand.hbm [shape: f32[4,4], index: 1, kind: input, shape index: {}]
  %s2 = inlined_call_operand.vmem [shape: f32[1,128], index: 2, kind: input, shape index: {}]
  %s3 = inlined_call_operand.vmem [shape: f32[1,128], index: 3, kind: input, shape index: {}]
  %s4 = inlined_call_operand.hbm [shape: f32[4,128], index: 4, kind: output, shape index: {}]
  %s5 = sld [smem:[#allocation0]]
  $region34: #{tpu_custom_call.1} parent=0
    _
  %s7 = ssub.s32 1, %s5
  %s8 = scalar_select 0, %s7, %s5
  $region1: #{tpu_custom_call.1} parent=0
    #allocation2 [shape = 'u8[2048]{0}', space=vmem, size = 0x800, scoped, tag = 'input window, operand 0, single buffered']
    #allocation3 [shape = 's32[1]{0}', space=sflag, size = 0x4, scoped, tag = 'scoped memory for tpu_custom_call.1']
    #allocation4 [shape = 's32[1]{0}', space=sflag, size = 0x4, scoped, tag = 'scoped memory for tpu_custom_call.1']
    #allocation5 [shape = 'u8[2048]{0}', space=vmem, size = 0x800, scoped, tag = 'input window, operand 1, single buffered']
    #allocation6 [shape = 's32[1]{0}', space=sflag, size = 0x4, scoped, tag = 'scoped memory for tpu_custom_call.1']
    #allocation7 [shape = 'u8[2048]{0}', space=vmem, size = 0x800, scoped, tag = 'output window, operand 0, single buffered']
    %9 = vsyncpa [#allocation3], 0
    %10 = vsyncpa [#allocation6], 0
    %11 = vsyncpa [#allocation4], 0
    // Predicated region
    $region2: #{tpu_custom_call.1} parent=1 // pred_check
      _
    $region3: #{tpu_custom_call.1} parent=1 // pred_check_branch
      %13 = sbr.rel (0) target = $region5
    $region4: #{tpu_custom_call.1} parent=1 // pred_region
      %s15 = ssub.s32 64, 64
      %16 = vsyncadd [#allocation3], %s15
      %s18 = sshll.u32 [#allocation2], 4
      %s19 = int_to_ptr.vmem [resolvable:$true] %s18
      %21 = dma.hbm_to_vmem [thread:$0]  %s0, 64, %s19, [#allocation3]
    $region5: #{tpu_custom_call.1} parent=1 // pred_fallthru
      _
    // Predicated region
    $region6: #{tpu_custom_call.1} parent=1 // pred_check
      _
    $region7: #{tpu_custom_call.1} parent=1 // pred_check_branch
      %23 = sbr.rel (0) target = $region9
    $region8: #{tpu_custom_call.1} parent=1 // pred_region
      %s25 = ssub.s32 64, 64
      %26 = vsyncadd [#allocation6], %s25
      %s28 = sshll.u32 [#allocation5], 4
      %s29 = int_to_ptr.vmem [resolvable:$true] %s28
      %31 = dma.hbm_to_vmem [thread:$0]  %s1, 64, %s29, [#allocation6]
    $region9: #{tpu_custom_call.1} parent=1 // pred_fallthru
      _
    // Predicated region
    $region10: #{tpu_custom_call.1} parent=1 // pred_check
      _
    $region11: #{tpu_custom_call.1} parent=1 // pred_check_branch
      %33 = sbr.rel (0) target = $region13
    $region12: #{tpu_custom_call.1} parent=1 // pred_region
      _
    $region13: #{tpu_custom_call.1} parent=1 // pred_fallthru
      _
    // Predicated region
    $region14: #{tpu_custom_call.1} parent=1 // pred_check
      _
    $region15: #{tpu_custom_call.1} parent=1 // pred_check_branch
      %35 = sbr.rel (0) target = $region17
    $region16: #{tpu_custom_call.1} parent=1 // pred_region
      _
    $region17: #{tpu_custom_call.1} parent=1 // pred_fallthru
      _
    // Predicated region
    $region18: #{tpu_custom_call.1} parent=1 // pred_check
      _
    $region19: #{tpu_custom_call.1} parent=1 // pred_check_branch
      %37 = sbr.rel (0) target = $region21
    $region20: #{tpu_custom_call.1} parent=1 // pred_region
      %38 = dma.done [#allocation3], 64
    $region21: #{tpu_custom_call.1} parent=1 // pred_fallthru
      _
    // Predicated region
    $region22: #{tpu_custom_call.1} parent=1 // pred_check
      _
    $region23: #{tpu_custom_call.1} parent=1 // pred_check_branch
      %40 = sbr.rel (0) target = $region25
    $region24: #{tpu_custom_call.1} parent=1 // pred_region
      %41 = dma.done [#allocation6], 64
    $region25: #{tpu_custom_call.1} parent=1 // pred_fallthru
      _
    %v42 = vld [vmem:[#allocation2] sm:$0xf]
    %v43 = vld [vmem:[%s2] sm:$0x1]
    %v44 = vld [vmem:[%s3] sm:$0x1]
    %v45 = vlaneseq
    %v46 = vand.u32 %v45, 127
    %vm47 = vcmp.ge.s32.totalorder %v46, 0
    %vm48 = vcmp.lt.s32.totalorder %v46, 32
    %vm49 = vmand %vm47, %vm48
    %v50 = vsel %vm49, 1, 0
    %vm51 = vcmp.eq.s32.totalorder %v50, 1
    %v52 = vsel %vm51, %v42, 0.0
    %vm53 = vcmask 1043456
    %v54 = vsel %vm53, %v52, 0.0
    %55 = vadd.xlane.f32.xlu0 %v54
    %v56 = vpop.xlane.xlu0 %55
    %v57 = vmul.f32 %v56, 0.03125
    %v58 = vsel %vm51, %v57, 0.0
    %vm59 = vcmp.ge.s32.totalorder %v46, 32
    %vm60 = vcmp.lt.s32.totalorder %v46, 64
    %vm61 = vmand %vm59, %vm60
    %v62 = vsel %vm61, 1, 0
    %vm63 = vcmp.eq.s32.totalorder %v62, 1
    %v64 = vsel %vm63, %v42, 0.0
    %v65 = vsel %vm53, %v64, 0.0
    %66 = vadd.xlane.f32.xlu0 %v65
    %v67 = vpop.xlane.xlu0 %66
    %v68 = vmul.f32 %v67, 0.03125
    %v69 = vsel %vm63, %v68, %v58
    %vm70 = vcmp.ge.s32.totalorder %v46, 64
    %vm71 = vcmp.lt.s32.totalorder %v46, 96
    %vm72 = vmand %vm70, %vm71
    %v73 = vsel %vm72, 1, 0
    %vm74 = vcmp.eq.s32.totalorder %v73, 1
    %v75 = vsel %vm74, %v42, 0.0
    %v76 = vsel %vm53, %v75, 0.0
    %77 = vadd.xlane.f32.xlu0 %v76
    %v78 = vpop.xlane.xlu0 %77
    %v79 = vmul.f32 %v78, 0.03125
    %v80 = vsel %vm74, %v79, %v69
    %vm81 = vcmp.ge.s32.totalorder %v46, 96
    %vm82 = vcmp.lt.s32.totalorder %v46, 128
    %vm83 = vmand %vm81, %vm82
    %v84 = vsel %vm83, 1, 0
    %vm85 = vcmp.eq.s32.totalorder %v84, 1
    %v86 = vsel %vm85, %v42, 0.0
    %v87 = vsel %vm53, %v86, 0.0
    %88 = vadd.xlane.f32.xlu0 %v87
    %v89 = vpop.xlane.xlu0 %88
    %v90 = vmul.f32 %v89, 0.03125
    %v91 = vsel %vm85, %v90, %v80
    %v92 = vsub.f32 %v42, %v91
    %v93 = vmul.f32 %v92, %v92
    %v94 = vsel %vm51, %v93, 0.0
    %v95 = vsel %vm53, %v94, 0.0
    %96 = vadd.xlane.f32.xlu0 %v95
    %v97 = vpop.xlane.xlu0 %96
    %v98 = vmul.f32 %v97, 0.03125
    %v99 = vadd.f32 %v98, 1e-05
    %v100 = vrsqrt.pop %v99
    %v101 = vsel %vm51, %v100, 0.0
    %v102 = vsel %vm63, %v93, 0.0
    %v103 = vsel %vm53, %v102, 0.0
    %104 = vadd.xlane.f32.xlu0 %v103
    %v105 = vpop.xlane.xlu0 %104
    %v106 = vmul.f32 %v105, 0.03125
    %v107 = vadd.f32 %v106, 1e-05
    %v108 = vrsqrt.pop %v107
    %v109 = vsel %vm63, %v108, %v101
    %v110 = vsel %vm74, %v93, 0.0
    %v111 = vsel %vm53, %v110, 0.0
    %112 = vadd.xlane.f32.xlu0 %v111
    %v113 = vpop.xlane.xlu0 %112
    %v114 = vmul.f32 %v113, 0.03125
    %v115 = vadd.f32 %v114, 1e-05
    %v116 = vrsqrt.pop %v115
    %v117 = vsel %vm74, %v116, %v109
    %v118 = vsel %vm85, %v93, 0.0
    %v119 = vsel %vm53, %v118, 0.0
    %120 = vadd.xlane.f32.xlu0 %v119
    %v121 = vpop.xlane.xlu0 %120
    %v122 = vmul.f32 %v121, 0.03125
    %v123 = vadd.f32 %v122, 1e-05
    %v124 = vrsqrt.pop %v123
    %v125 = vsel %vm85, %v124, %v117
    %v126 = vmul.f32 %v92, %v125
    %v128 = vlaneseq
    %v129 = vshrl.u32 %v128, 7
    %v130 = vsub.s32 0, %v129
    %v131 = vrot.slane %v43, %v130
    %v133 = vmul.f32 %v126, %v131
    %v135 = vlaneseq
    %v136 = vshrl.u32 %v135, 7
    %v137 = vsub.s32 0, %v136
    %v138 = vrot.slane %v44, %v137
    %v140 = vadd.f32 %v133, %v138
    %v141 = vld [vmem:[#allocation5] sm:$0xf]
    %143 = vset.pattern.permute.xlu0 0
    %144 = vperm.xlu0 %143, %v141
    %v145 = vpop.permute.xlu0 %144
    %v147 = vsel %vm51, %v145, 0.0
    %148 = vset.pattern.permute.xlu0 1
    %149 = vperm.xlu0 %148, %v141
    %v150 = vpop.permute.xlu0 %149
    %v152 = vsel %vm63, %v150, %v147
    %153 = vset.pattern.permute.xlu0 2
    %154 = vperm.xlu0 %153, %v141
    %v155 = vpop.permute.xlu0 %154
    %v157 = vsel %vm74, %v155, %v152
    %158 = vset.pattern.permute.xlu0 3
    %159 = vperm.xlu0 %158, %v141
    %v160 = vpop.permute.xlu0 %159
    %v162 = vsel %vm85, %v160, %v157
    %v163 = vmul.f32 %v140, %v162
    %164 = vst [vmem:[#allocation7] sm:$0xf] %v163
    // Predicated region
    $region26: #{tpu_custom_call.1} parent=1 // pred_check
      _
    $region27: #{tpu_custom_call.1} parent=1 // pred_check_branch
      %166 = sbr.rel (0) target = $region29
    $region28: #{tpu_custom_call.1} parent=1 // pred_region
      %s168 = ssub.s32 64, 64
      %169 = vsyncadd [#allocation4], %s168
      %s171 = sshll.u32 [#allocation7], 4
      %s172 = int_to_ptr.vmem [resolvable:$true] %s171
      %174 = dma.vmem_to_hbm [thread:$0]  %s172, 64, %s4, [#allocation4]
    $region29: #{tpu_custom_call.1} parent=1 // pred_fallthru
      _
    // Predicated region
    $region30: #{tpu_custom_call.1} parent=1 // pred_check
      _
    $region31: #{tpu_custom_call.1} parent=1 // pred_check_branch
      %176 = sbr.rel (0) target = $region33
    $region32: #{tpu_custom_call.1} parent=1 // pred_region
      %177 = dma.done [#allocation4], 64
    $region33: #{tpu_custom_call.1} parent=1 // pred_fallthru
      _
    %178 = vsyncpa [#allocation3], 1
    %179 = vsyncpa [#allocation6], 1
    %180 = vsyncpa [#allocation4], 1

</llo_original>
